<compile_context>
chip_gen: v5e
topology: v5e:2x2
jax: 0.10.0
libtpu: 0.0.40
codegen_flags: <defaults>
</compile_context>

<pallas_src>
import functools

import jax
import jax.numpy as jnp
from jax.experimental import pallas as pl
from jax.experimental.pallas import tpu as pltpu

_LANE = 128      # vreg lane width (last dim)
_SUBLANE = 8     # vreg sublane width (second-to-last dim)
_MAX_TB = 1024   # cap on batch-tile rows (VMEM is plentiful at these widths)


def _round_up(n, m):
    return ((n + m - 1) // m) * m


def _num_tensorcores():
    """Best-effort TensorCore count per chip (2 on v7x, else 1)."""
    try:
        kind = jax.devices()[0].device_kind.lower()
        if "v7" in kind:
            return 2
    except Exception:
        pass
    return 1


def _choose_tb(batch, num_cores):
    """Pick the batch tile: one big block on single-TC chips, a grid whose
    length is a multiple of num_cores on multi-TC chips."""
    batch8 = _round_up(max(batch, 1), _SUBLANE)
    if num_cores <= 1:
        tb = min(batch8, _MAX_TB)
    else:
        n_blocks = max(num_cores, -(-batch8 // _MAX_TB))
        n_blocks = _round_up(n_blocks, num_cores)      # keep grid % num_cores == 0
        tb = _round_up(-(-batch8 // n_blocks), _SUBLANE)
    return max(tb, _SUBLANE)


def _make_mlp_kernel(num_layers, padded_out_sizes, compute_dtype):
    """Fused MLP kernel: chain of matmul + bias (+ ReLU except last layer).

    Kernel args: (x_ref, w0_ref, ..., wL_ref, bias_stack_ref, o_ref).
    MXU operands are `compute_dtype` (bf16 by default); accumulation / bias /
    ReLU are f32 (safe on v5e's VPU, identical math on v6e/v7x).
    """

    def kernel(x_ref, *rest):
        o_ref = rest[-1]
        bias_ref = rest[-2]
        w_refs = rest[:num_layers]

        h = x_ref[...]                                   # compute_dtype already
        for i in range(num_layers):
            w = w_refs[i][...]
            acc = jnp.dot(h.astype(compute_dtype), w,
                          preferred_element_type=jnp.float32)
            n = padded_out_sizes[i]
            acc = acc + bias_ref[i:i + 1, 0:n]           # f32 bias, broadcast rows
            if i < num_layers - 1:
                acc = jnp.maximum(acc, 0.0)              # ReLU (Dropout = identity, eval)
            h = acc
        o_ref[...] = h.astype(o_ref.dtype)               # bf16 lane-dense store

    return kernel


def prepare_params(weights, biases, compute_dtype=jnp.bfloat16):
    """One-time parameter prep (hoisted out of the per-call path).

    weights: list of (in, out) f32 arrays (transpose of torch's (out, in))
    biases:  list of (1, out) f32 arrays
    Returns (padded/cast weight tuple, stacked f32 bias, real output size).
    """
    num_layers = len(weights)
    assert len(biases) == num_layers
    in_size = weights[0].shape[0]
    out_size = weights[-1].shape[1]

    out_pads = [_round_up(w.shape[1], _LANE) for w in weights]   # 128, not 256 (HBM-bound)
    k_pads = [in_size] + out_pads[:-1]                           # first K stays unpadded

    wps = []
    for w, kp, op in zip(weights, k_pads, out_pads):
        wp = jnp.zeros((kp, op), compute_dtype)
        wp = wp.at[:w.shape[0], :w.shape[1]].set(w.astype(compute_dtype))
        wps.append(wp)

    max_out_pad = max(out_pads)
    bias_stack = jnp.zeros((num_layers, max_out_pad), jnp.float32)
    for i, b in enumerate(biases):
        bias_stack = bias_stack.at[i, :b.shape[-1]].set(
            b.reshape(-1).astype(jnp.float32))

    return tuple(wps), bias_stack, out_size


@functools.partial(jax.jit, static_argnames=("tb", "out_size"))
def _fcnn_forward_impl(x, wps, bias_stack, *, tb, out_size):
    compute_dtype = wps[0].dtype
    batch, in_size = x.shape
    num_layers = len(wps)
    out_pads = [int(w.shape[1]) for w in wps]
    out_pad_last = out_pads[-1]

    # Cast (and pad the batch only if the tile doesn't divide it) -- fused by jit.
    batch_pad = _round_up(batch, tb)
    xc = x.astype(compute_dtype)
    if batch_pad != batch:
        xc = jnp.pad(xc, ((0, batch_pad - batch), (0, 0)))

    grid = (batch_pad // tb,)
    kernel = _make_mlp_kernel(num_layers, out_pads, compute_dtype)

    # x tile moves with the grid (last dim = full 34-lane array dim, legal & unpadded).
    in_specs = [pl.BlockSpec((tb, in_size), lambda i: (i, 0))]
    # Weights / bias are resident in VMEM (constant block index across the grid).
    # NOTE: re-budget this "all weights resident" strategy for v7x (64 MiB VMEM)
    # if hidden widths ever grow to ~4096; at 128-wide layers it is ~96 KB total.
    for wp in wps:
        in_specs.append(pl.BlockSpec(wp.shape, lambda i: (0, 0)))
    in_specs.append(pl.BlockSpec(bias_stack.shape, lambda i: (0, 0)))

    out_specs = pl.BlockSpec((tb, out_pad_last), lambda i: (i, 0))
    out_shape = jax.ShapeDtypeStruct((batch_pad, out_pad_last), compute_dtype)

    flops = 2 * batch_pad * sum(int(w.shape[0]) * int(w.shape[1]) for w in wps)
    bytes_accessed = (
        xc.size * xc.dtype.itemsize
        + sum(int(w.size) * w.dtype.itemsize for w in wps)
        + bias_stack.size * bias_stack.dtype.itemsize
        + batch_pad * out_pad_last * jnp.dtype(compute_dtype).itemsize)

    fn = pl.pallas_call(
        kernel,
        out_shape=out_shape,
        grid_spec=pl.GridSpec(grid=grid, in_specs=in_specs, out_specs=out_specs),
        compiler_params=pltpu.CompilerParams(
            # Batch tiles are independent -> shard across the 2 TCs on v7x.
            dimension_semantics=("parallel",),
        ),
        cost_estimate=pl.CostEstimate(flops=flops, transcendentals=0,
                                      bytes_accessed=bytes_accessed),
    )
    out_padded = fn(xc, *wps, bias_stack)
    # Cast + slice fuse inside this jit; padded rows/cols are discarded here.
    return out_padded[:batch, :out_size].astype(jnp.float32)


def fcnn_forward(x, prepared, *, tb=None):
    """x: (batch, input_size) f32; prepared: output of prepare_params()."""
    wps, bias_stack, out_size = prepared
    if tb is None:
        tb = _choose_tb(x.shape[0], _num_tensorcores())
    return _fcnn_forward_impl(x, wps, bias_stack, tb=tb, out_size=out_size)


def init_params(key, input_size, hidden_sizes, output_size):
    """Deterministic synthetic parameter init (matches nn.Linear shapes)."""
    weights, biases = [], []
    sizes = [input_size] + list(hidden_sizes) + [output_size]
    for i in range(len(sizes) - 1):
        fan_in, fan_out = sizes[i], sizes[i + 1]
        key, kw, kb = jax.random.split(key, 3)
        bound = 1.0 / (fan_in ** 0.5)
        # torch.nn.Linear stores weight as (out, in); we store its transpose.
        w = jax.random.uniform(kw, (fan_in, fan_out), jnp.float32, -bound, bound)
        b = jax.random.uniform(kb, (1, fan_out), jnp.float32, -bound, bound)
        weights.append(w)
        biases.append(b)
    return weights, biases


if __name__ == "__main__":
    # Shapes consistent with a joints2D -> 3D lifting MLP:
    #   input  = 17 joints * 2 coords = 34
    #   output = 17 joints * 3 coords = 51
    batch = 256
    input_size = 34
    hidden_sizes = [64, 128]
    output_size = 51
    dropout = 0.5  # identity at inference

    key = jax.random.PRNGKey(0)
    key, kx = jax.random.split(key)
    x = jax.random.normal(kx, (batch, input_size), jnp.float32)

    weights, biases = init_params(key, input_size, hidden_sizes, output_size)

    # One-time parameter prep (padding + bf16 cast) hoisted out of the call path.
    prepared = prepare_params(weights, biases)

    out = fcnn_forward(x, prepared)
    out = jax.block_until_ready(out)

    # Reference in plain JAX with the same bf16 operand quantization
    # (f32 accumulation) and the same final bf16 output rounding;
    # eval-mode dropout = identity.
    h = x
    for i, (w, b) in enumerate(zip(weights, biases)):
        h = jnp.dot(h.astype(jnp.bfloat16), w.astype(jnp.bfloat16),
                    preferred_element_type=jnp.float32) + b
        if i < len(weights) - 1:
            h = jnp.maximum(h, 0.0)
    ref = h.astype(jnp.bfloat16).astype(jnp.float32)

    assert out.shape == (batch, output_size)
    err = float(jnp.max(jnp.abs(out - ref)))
    assert jnp.allclose(out, ref, atol=2e-2, rtol=2e-2), f"max abs err {err}"

    print("KERNEL_OK")
</pallas_src>

<mosaic_0001>
module attributes {stable_mosaic.version = 11 : i64} {
  func.func @kernel(%arg0: i32, %arg1: memref<256x34xbf16, #tpu.memory_space<vmem>>, %arg2: memref<34x128xbf16, #tpu.memory_space<vmem>>, %arg3: memref<128x128xbf16, #tpu.memory_space<vmem>>, %arg4: memref<128x128xbf16, #tpu.memory_space<vmem>>, %arg5: memref<3x128xf32, #tpu.memory_space<vmem>>, %arg6: memref<256x128xbf16, #tpu.memory_space<vmem>>) attributes {dimension_semantics = [#tpu.dimension_semantics<parallel>], iteration_bounds = array<i64: 1>, scalar_prefetch = 0 : i64, scratch_operands = 0 : i64, tpu.core_type = #tpu.core_type<tc>, window_params = [{transform_indices = @transform_0, window_bounds = array<i64: 256, 34>}, {pipeline_mode = #tpu.pipeline_mode<synchronous>, transform_indices = @transform_1, window_bounds = array<i64: 34, 128>}, {pipeline_mode = #tpu.pipeline_mode<synchronous>, transform_indices = @transform_2, window_bounds = array<i64: 128, 128>}, {pipeline_mode = #tpu.pipeline_mode<synchronous>, transform_indices = @transform_3, window_bounds = array<i64: 128, 128>}, {pipeline_mode = #tpu.pipeline_mode<synchronous>, transform_indices = @transform_4, window_bounds = array<i64: 3, 128>}, {transform_indices = @transform_5, window_bounds = array<i64: 256, 128>}]} {
    %c0 = arith.constant 0 : index
    %c0_0 = arith.constant 0 : index
    %0 = vector.load %arg1[%c0, %c0_0] : memref<256x34xbf16, #tpu.memory_space<vmem>>, vector<256x34xbf16>
    %c0_1 = arith.constant 0 : index
    %c0_2 = arith.constant 0 : index
    %1 = vector.load %arg2[%c0_1, %c0_2] : memref<34x128xbf16, #tpu.memory_space<vmem>>, vector<34x128xbf16>
    %cst = arith.constant dense<0.000000e+00> : vector<256x128xf32>
    %2 = tpu.matmul %0, %1, %cst {dimension_numbers = #tpu.dot_dimension_numbers<[1], [0], [0], [1], [0, 0, 1, 1], [], []>} : vector<256x34xbf16>, vector<34x128xbf16>, vector<256x128xf32> -> vector<256x128xf32>
    %c0_3 = arith.constant 0 : index
    %c0_4 = arith.constant 0 : index
    %3 = vector.load %arg5[%c0_3, %c0_4] : memref<3x128xf32, #tpu.memory_space<vmem>>, vector<1x128xf32>
    %4 = vector.broadcast %3 : vector<1x128xf32> to vector<256x128xf32>
    %5 = arith.addf %2, %4 : vector<256x128xf32>
    %cst_5 = arith.constant 0.000000e+00 : f32
    %6 = vector.broadcast %cst_5 : f32 to vector<256x128xf32>
    %7 = arith.maximumf %5, %6 : vector<256x128xf32>
    %c0_6 = arith.constant 0 : index
    %c0_7 = arith.constant 0 : index
    %8 = vector.load %arg3[%c0_6, %c0_7] : memref<128x128xbf16, #tpu.memory_space<vmem>>, vector<128x128xbf16>
    %9 = arith.truncf %7 : vector<256x128xf32> to vector<256x128xbf16>
    %cst_8 = arith.constant dense<0.000000e+00> : vector<256x128xf32>
    %10 = tpu.matmul %9, %8, %cst_8 {dimension_numbers = #tpu.dot_dimension_numbers<[1], [0], [0], [1], [0, 0, 1, 1], [], []>} : vector<256x128xbf16>, vector<128x128xbf16>, vector<256x128xf32> -> vector<256x128xf32>
    %c1 = arith.constant 1 : index
    %c0_9 = arith.constant 0 : index
    %11 = vector.load %arg5[%c1, %c0_9] : memref<3x128xf32, #tpu.memory_space<vmem>>, vector<1x128xf32>
    %12 = vector.broadcast %11 : vector<1x128xf32> to vector<256x128xf32>
    %13 = arith.addf %10, %12 : vector<256x128xf32>
    %cst_10 = arith.constant 0.000000e+00 : f32
    %14 = vector.broadcast %cst_10 : f32 to vector<256x128xf32>
    %15 = arith.maximumf %13, %14 : vector<256x128xf32>
    %c0_11 = arith.constant 0 : index
    %c0_12 = arith.constant 0 : index
    %16 = vector.load %arg4[%c0_11, %c0_12] : memref<128x128xbf16, #tpu.memory_space<vmem>>, vector<128x128xbf16>
    %17 = arith.truncf %15 : vector<256x128xf32> to vector<256x128xbf16>
    %cst_13 = arith.constant dense<0.000000e+00> : vector<256x128xf32>
    %18 = tpu.matmul %17, %16, %cst_13 {dimension_numbers = #tpu.dot_dimension_numbers<[1], [0], [0], [1], [0, 0, 1, 1], [], []>} : vector<256x128xbf16>, vector<128x128xbf16>, vector<256x128xf32> -> vector<256x128xf32>
    %c2 = arith.constant 2 : index
    %c0_14 = arith.constant 0 : index
    %19 = vector.load %arg5[%c2, %c0_14] : memref<3x128xf32, #tpu.memory_space<vmem>>, vector<1x128xf32>
    %20 = vector.broadcast %19 : vector<1x128xf32> to vector<256x128xf32>
    %21 = arith.addf %18, %20 : vector<256x128xf32>
    %22 = arith.truncf %21 : vector<256x128xf32> to vector<256x128xbf16>
    %c0_15 = arith.constant 0 : index
    %c0_16 = arith.constant 0 : index
    %23 = vector.load %arg6[%c0_15, %c0_16] : memref<256x128xbf16, #tpu.memory_space<vmem>>, vector<256x128xbf16>
    tpu.vector_store %arg6[%c0_15, %c0_16], %22 {strides = array<i32>} : memref<256x128xbf16, #tpu.memory_space<vmem>>, vector<256x128xbf16>,
    return
  }
  func.func @transform_0(%arg0: i32) -> (i32, i32) {
    %c0_i32 = arith.constant 0 : i32
    %c0_i32_0 = arith.constant 0 : i32
    return %arg0, %c0_i32 : i32, i32
  }
  func.func @transform_1(%arg0: i32) -> (i32, i32) {
    %c0_i32 = arith.constant 0 : i32
    %c0_i32_0 = arith.constant 0 : i32
    %c0_i32_1 = arith.constant 0 : i32
    return %c0_i32, %c0_i32_0 : i32, i32
  }
  func.func @transform_2(%arg0: i32) -> (i32, i32) {
    %c0_i32 = arith.constant 0 : i32
    %c0_i32_0 = arith.constant 0 : i32
    %c0_i32_1 = arith.constant 0 : i32
    return %c0_i32, %c0_i32_0 : i32, i32
  }
  func.func @transform_3(%arg0: i32) -> (i32, i32) {
    %c0_i32 = arith.constant 0 : i32
    %c0_i32_0 = arith.constant 0 : i32
    %c0_i32_1 = arith.constant 0 : i32
    return %c0_i32, %c0_i32_0 : i32, i32
  }
  func.func @transform_4(%arg0: i32) -> (i32, i32) {
    %c0_i32 = arith.constant 0 : i32
    %c0_i32_0 = arith.constant 0 : i32
    %c0_i32_1 = arith.constant 0 : i32
    return %c0_i32, %c0_i32_0 : i32, i32
  }
  func.func @transform_5(%arg0: i32) -> (i32, i32) {
    %c0_i32 = arith.constant 0 : i32
    %c0_i32_0 = arith.constant 0 : i32
    return %arg0, %c0_i32 : i32, i32
  }
}

</mosaic_0001>

<llo_original>
// kernel: _fcnn_forward_impl.1
$region0: #{_fcnn_forward_impl.1}
  #allocation0 [shape = 'u32[]', space=smem, size = 0x4, offset = 0x4, fixed_abs, tag = 'smem constant byte address 0x4 - core index']
  #allocation1 [shape = 'u32[72,128]{1,0:T(1,128)}', space=vmem, size = 0x9000, scoped, tag = 'internal scratch']
  %s0 = inlined_call_operand.vmem [shape: bf16[256,34], index: 0, kind: input, shape index: {}]
  %s1 = inlined_call_operand.vmem [shape: bf16[34,128], index: 1, kind: input, shape index: {}]
  %s2 = inlined_call_operand.vmem [shape: bf16[128,128], index: 2, kind: input, shape index: {}]
  %s3 = inlined_call_operand.vmem [shape: bf16[128,128], index: 3, kind: input, shape index: {}]
  %s4 = inlined_call_operand.vmem [shape: f32[3,128], index: 4, kind: input, shape index: {}]
  %s5 = inlined_call_operand.vmem [shape: bf16[256,128], index: 5, kind: output, shape index: {}]
  %s6 = sld [smem:[#allocation0]]
  $region30: #{_fcnn_forward_impl.1} parent=0
    _
  %s8 = ssub.s32 1, %s6
  %s9 = scalar_select 0, %s8, %s6
  // Predicated region
  $region2: #{_fcnn_forward_impl.1} parent=0 // pred_check
    _
  $region3: #{_fcnn_forward_impl.1} parent=0 // pred_check_branch
    %11 = sbr.rel (0) target = $region5
  $region4: #{_fcnn_forward_impl.1} parent=0 // pred_region
    _
  $region5: #{_fcnn_forward_impl.1} parent=0 // pred_fallthru
    _
  // Predicated region
  $region6: #{_fcnn_forward_impl.1} parent=0 // pred_check
    _
  $region7: #{_fcnn_forward_impl.1} parent=0 // pred_check_branch
    %13 = sbr.rel (0) target = $region9
  $region8: #{_fcnn_forward_impl.1} parent=0 // pred_region
    _
  $region9: #{_fcnn_forward_impl.1} parent=0 // pred_fallthru
    _
  // Predicated region
  $region10: #{_fcnn_forward_impl.1} parent=0 // pred_check
    _
  $region11: #{_fcnn_forward_impl.1} parent=0 // pred_check_branch
    %15 = sbr.rel (0) target = $region13
  $region12: #{_fcnn_forward_impl.1} parent=0 // pred_region
    _
  $region13: #{_fcnn_forward_impl.1} parent=0 // pred_fallthru
    _
  // Predicated region
  $region14: #{_fcnn_forward_impl.1} parent=0 // pred_check
    _
  $region15: #{_fcnn_forward_impl.1} parent=0 // pred_check_branch
    %17 = sbr.rel (0) target = $region17
  $region16: #{_fcnn_forward_impl.1} parent=0 // pred_region
    _
  $region17: #{_fcnn_forward_impl.1} parent=0 // pred_fallthru
    _
  // Predicated region
  $region18: #{_fcnn_forward_impl.1} parent=0 // pred_check
    _
  $region19: #{_fcnn_forward_impl.1} parent=0 // pred_check_branch
    %19 = sbr.rel (0) target = $region21
  $region20: #{_fcnn_forward_impl.1} parent=0 // pred_region
    _
  $region21: #{_fcnn_forward_impl.1} parent=0 // pred_fallthru
    _
  %v21 = vld [vmem:[%s0] sm:$0xf]
  %v22 = vld [vmem:[%s0 + $0x4] sm:$0xf]
  %v23 = vld [vmem:[%s0 + $0x8] sm:$0xf]
  %v24 = vld [vmem:[%s0 + $0xc] sm:$0xf]
  %v25 = vld [vmem:[%s0 + $0x10] sm:$0xf]
  %v26 = vld [vmem:[%s0 + $0x14] sm:$0xf]
  %v27 = vld [vmem:[%s0 + $0x18] sm:$0xf]
  %v28 = vld [vmem:[%s0 + $0x1c] sm:$0xf]
  %v29 = vld [vmem:[%s0 + $0x20] sm:$0xf]
  %v30 = vld [vmem:[%s0 + $0x24] sm:$0xf]
  %v31 = vld [vmem:[%s0 + $0x28] sm:$0xf]
  %v32 = vld [vmem:[%s0 + $0x2c] sm:$0xf]
  %v33 = vld [vmem:[%s0 + $0x30] sm:$0xf]
  %v34 = vld [vmem:[%s0 + $0x34] sm:$0xf]
  %v35 = vld [vmem:[%s0 + $0x38] sm:$0xf]
  %v36 = vld [vmem:[%s0 + $0x3c] sm:$0xf]
  %v37 = vld [vmem:[%s0 + $0x40] sm:$0xf]
  %v38 = vld [vmem:[%s0 + $0x44] sm:$0xf]
  %v39 = vld [vmem:[%s0 + $0x48] sm:$0xf]
  %v40 = vld [vmem:[%s0 + $0x4c] sm:$0xf]
  %v41 = vld [vmem:[%s0 + $0x50] sm:$0xf]
  %v42 = vld [vmem:[%s0 + $0x54] sm:$0xf]
  %v43 = vld [vmem:[%s0 + $0x58] sm:$0xf]
  %v44 = vld [vmem:[%s0 + $0x5c] sm:$0xf]
  %v45 = vld [vmem:[%s0 + $0x60] sm:$0xf]
  %v46 = vld [vmem:[%s0 + $0x64] sm:$0xf]
  %v47 = vld [vmem:[%s0 + $0x68] sm:$0xf]
  %v48 = vld [vmem:[%s0 + $0x6c] sm:$0xf]
  %v49 = vld [vmem:[%s0 + $0x70] sm:$0xf]
  %v50 = vld [vmem:[%s0 + $0x74] sm:$0xf]
  %v51 = vld [vmem:[%s0 + $0x78] sm:$0xf]
  %v52 = vld [vmem:[%s0 + $0x7c] sm:$0xf]
  %v53 = vld [vmem:[%s1] sm:$0xf]
  %v54 = vld [vmem:[%s1 + $0x4] sm:$0xf]
  %v55 = vld [vmem:[%s1 + $0x8] sm:$0xf]
  %v56 = vld [vmem:[%s1 + $0xc] sm:$0xf]
  %v57 = vld [vmem:[%s1 + $0x10] sm:$0x1]
  %v58 = vld [vmem:[%s4] sm:$0x1]
  %v59 = vperm.slane %v58, 0
  %v92 = vunpack.c.l.b16 %v21
  %v93 = vunpack.c.l.b16 %v22
  %v94 = vunpack.c.l.b16 %v23
  %v95 = vunpack.c.l.b16 %v24
  %v96 = vunpack.c.l.b16 %v25
  %v97 = vunpack.c.l.b16 %v26
  %v98 = vunpack.c.l.b16 %v27
  %v99 = vunpack.c.l.b16 %v28
  %v100 = vunpack.c.l.b16 %v29
  %v101 = vunpack.c.l.b16 %v30
  %v102 = vunpack.c.l.b16 %v31
  %v103 = vunpack.c.l.b16 %v32
  %v104 = vunpack.c.l.b16 %v33
  %v105 = vunpack.c.l.b16 %v34
  %v106 = vunpack.c.l.b16 %v35
  %v107 = vunpack.c.l.b16 %v36
  %v108 = vunpack.c.l.b16 %v37
  %v109 = vunpack.c.l.b16 %v38
  %v110 = vunpack.c.l.b16 %v39
  %v111 = vunpack.c.l.b16 %v40
  %v112 = vunpack.c.l.b16 %v41
  %v113 = vunpack.c.l.b16 %v42
  %v114 = vunpack.c.l.b16 %v43
  %v115 = vunpack.c.l.b16 %v44
  %v116 = vunpack.c.l.b16 %v45
  %v117 = vunpack.c.l.b16 %v46
  %v118 = vunpack.c.l.b16 %v47
  %v119 = vunpack.c.l.b16 %v48
  %v120 = vunpack.c.l.b16 %v49
  %v121 = vunpack.c.l.b16 %v50
  %v122 = vunpack.c.l.b16 %v51
  %v123 = vunpack.c.l.b16 %v52
  %v124 = vpack.c.b16 %v93, %v92
  %v125 = vpack.c.b16 %v95, %v94
  %v126 = vpack.c.b16 %v97, %v96
  %v127 = vpack.c.b16 %v99, %v98
  %v128 = vpack.c.b16 %v101, %v100
  %v129 = vpack.c.b16 %v103, %v102
  %v130 = vpack.c.b16 %v105, %v104
  %v131 = vpack.c.b16 %v107, %v106
  %v132 = vpack.c.b16 %v109, %v108
  %v133 = vpack.c.b16 %v111, %v110
  %v134 = vpack.c.b16 %v113, %v112
  %v135 = vpack.c.b16 %v115, %v114
  %v136 = vpack.c.b16 %v117, %v116
  %v137 = vpack.c.b16 %v119, %v118
  %v138 = vpack.c.b16 %v121, %v120
  %v139 = vpack.c.b16 %v123, %v122
  %v145 = vunpack.c.l.b16 %v53
  %v146 = vunpack.c.l.b16 %v54
  %v147 = vunpack.c.l.b16 %v55
  %v148 = vunpack.c.l.b16 %v56
  %v149 = vunpack.c.l.b16 %v57
  %v150 = vpack.c.b16 %v146, %v145
  %v151 = vpack.c.b16 %v148, %v147
  %v152 = vpack.c.b16 %v149, %v149
  %vm155 = vcmask 277504
  %v157 = vsel %vm155, %v124, 0
  %v160 = vsel %vm155, %v125, 0
  %v163 = vsel %vm155, %v126, 0
  %v166 = vsel %vm155, %v127, 0
  %v169 = vsel %vm155, %v128, 0
  %v172 = vsel %vm155, %v129, 0
  %v175 = vsel %vm155, %v130, 0
  %v178 = vsel %vm155, %v131, 0
  %v181 = vsel %vm155, %v132, 0
  %v184 = vsel %vm155, %v133, 0
  %v187 = vsel %vm155, %v134, 0
  %v190 = vsel %vm155, %v135, 0
  %v193 = vsel %vm155, %v136, 0
  %v196 = vsel %vm155, %v137, 0
  %v199 = vsel %vm155, %v138, 0
  %v202 = vsel %vm155, %v139, 0
  %vm204 = vcmask 1040384
  %v206 = vsel %vm204, %v152, 0
  %208 = vmatpush.bf16.msra.mxu0 0
  %209 = vmatpush.bf16.msra.mxu0 0
  %210 = vmatpush.bf16.msra.mxu0 0
  %211 = vmatpush.bf16.msra.mxu0 0
  %212 = vmatpush.bf16.msra.mxu0 0
  %213 = vmatpush.bf16.msra.mxu0 %v206
  %214 = vmatpush.bf16.msra.mxu0 %v151
  %215 = vmatpush.bf16.msra.mxu0 %v150
  %216 = vmatmul.bf16.gmra.mxu0 %v157
  %v217 = vpop.f32.mrf.mxu0
  %v218 = vadd.f32 %v59, %v217
  %v219 = vpop.f32.mrf.mxu0
  %v220 = vadd.f32 %v59, %v219
  %221 = vmatmul.bf16.gmra.mxu0 %v160
  %v222 = vpop.f32.mrf.mxu0
  %v223 = vadd.f32 %v59, %v222
  %v224 = vpop.f32.mrf.mxu0
  %v225 = vadd.f32 %v59, %v224
  %226 = vmatmul.bf16.gmra.mxu0 %v163
  %v227 = vpop.f32.mrf.mxu0
  %v228 = vadd.f32 %v59, %v227
  %v229 = vpop.f32.mrf.mxu0
  %v230 = vadd.f32 %v59, %v229
  %231 = vmatmul.bf16.gmra.mxu0 %v166
  %v232 = vpop.f32.mrf.mxu0
  %v233 = vadd.f32 %v59, %v232
  %v234 = vpop.f32.mrf.mxu0
  %v235 = vadd.f32 %v59, %v234
  %236 = vmatmul.bf16.gmra.mxu0 %v169
  %v237 = vpop.f32.mrf.mxu0
  %v238 = vadd.f32 %v59, %v237
  %v239 = vpop.f32.mrf.mxu0
  %v240 = vadd.f32 %v59, %v239
  %241 = vmatmul.bf16.gmra.mxu0 %v172
  %v242 = vpop.f32.mrf.mxu0
  %v243 = vadd.f32 %v59, %v242
  %v244 = vpop.f32.mrf.mxu0
  %v245 = vadd.f32 %v59, %v244
  %246 = vmatmul.bf16.gmra.mxu0 %v175
  %v247 = vpop.f32.mrf.mxu0
  %v248 = vadd.f32 %v59, %v247
  %v249 = vpop.f32.mrf.mxu0
  %v250 = vadd.f32 %v59, %v249
  %251 = vmatmul.bf16.gmra.mxu0 %v178
  %v252 = vpop.f32.mrf.mxu0
  %v253 = vadd.f32 %v59, %v252
  %v254 = vpop.f32.mrf.mxu0
  %v255 = vadd.f32 %v59, %v254
  %256 = vmatmul.bf16.gmra.mxu0 %v181
  %v257 = vpop.f32.mrf.mxu0
  %v258 = vadd.f32 %v59, %v257
  %v259 = vpop.f32.mrf.mxu0
  %v260 = vadd.f32 %v59, %v259
  %261 = vmatmul.bf16.gmra.mxu0 %v184
  %v262 = vpop.f32.mrf.mxu0
  %v263 = vadd.f32 %v59, %v262
  %v264 = vpop.f32.mrf.mxu0
  %v265 = vadd.f32 %v59, %v264
  %266 = vmatmul.bf16.gmra.mxu0 %v187
  %v267 = vpop.f32.mrf.mxu0
  %v268 = vadd.f32 %v59, %v267
  %v269 = vpop.f32.mrf.mxu0
  %v270 = vadd.f32 %v59, %v269
  %271 = vmatmul.bf16.gmra.mxu0 %v190
  %v272 = vpop.f32.mrf.mxu0
  %v273 = vadd.f32 %v59, %v272
  %v274 = vpop.f32.mrf.mxu0
  %v275 = vadd.f32 %v59, %v274
  %276 = vmatmul.bf16.gmra.mxu0 %v193
  %v277 = vpop.f32.mrf.mxu0
  %v278 = vadd.f32 %v59, %v277
  %v279 = vpop.f32.mrf.mxu0
  %v280 = vadd.f32 %v59, %v279
  %281 = vmatmul.bf16.gmra.mxu0 %v196
  %v282 = vpop.f32.mrf.mxu0
  %v283 = vadd.f32 %v59, %v282
  %v284 = vpop.f32.mrf.mxu0
  %v285 = vadd.f32 %v59, %v284
  %286 = vmatmul.bf16.gmra.mxu0 %v199
  %v287 = vpop.f32.mrf.mxu0
  %v288 = vadd.f32 %v59, %v287
  %v289 = vpop.f32.mrf.mxu0
  %v290 = vadd.f32 %v59, %v289
  %291 = vmatmul.bf16.gmra.mxu0 %v202
  %v292 = vpop.f32.mrf.mxu0
  %v293 = vadd.f32 %v59, %v292
  %v294 = vpop.f32.mrf.mxu0
  %v295 = vadd.f32 %v59, %v294
  %296 = vdwg.mxu0
  %v297 = vmax.f32 %v218, 0.0
  %v298 = vmax.f32 %v220, 0.0
  %v299 = vmax.f32 %v223, 0.0
  %v300 = vmax.f32 %v225, 0.0
  %v301 = vmax.f32 %v228, 0.0
  %v302 = vmax.f32 %v230, 0.0
  %v303 = vmax.f32 %v233, 0.0
  %v304 = vmax.f32 %v235, 0.0
  %v305 = vmax.f32 %v238, 0.0
  %v306 = vmax.f32 %v240, 0.0
  %v307 = vmax.f32 %v243, 0.0
  %v308 = vmax.f32 %v245, 0.0
  %v309 = vmax.f32 %v248, 0.0
  %v310 = vmax.f32 %v250, 0.0
  %v311 = vmax.f32 %v253, 0.0
  %v312 = vmax.f32 %v255, 0.0
  %v313 = vmax.f32 %v258, 0.0
  %v314 = vmax.f32 %v260, 0.0
  %v315 = vmax.f32 %v263, 0.0
  %v316 = vmax.f32 %v265, 0.0
  %v317 = vmax.f32 %v268, 0.0
  %v318 = vmax.f32 %v270, 0.0
  %v319 = vmax.f32 %v273, 0.0
  %v320 = vmax.f32 %v275, 0.0
  %v321 = vmax.f32 %v278, 0.0
  %v322 = vmax.f32 %v280, 0.0
  %v323 = vmax.f32 %v283, 0.0
  %v324 = vmax.f32 %v285, 0.0
  %v325 = vmax.f32 %v288, 0.0
  %v326 = vmax.f32 %v290, 0.0
  %v327 = vmax.f32 %v293, 0.0
  %v328 = vmax.f32 %v295, 0.0
  %v329 = vld [vmem:[%s2] sm:$0xf]
  %v330 = vld [vmem:[%s2 + $0x4] sm:$0xf]
  %v331 = vld [vmem:[%s2 + $0x8] sm:$0xf]
  %v332 = vld [vmem:[%s2 + $0xc] sm:$0xf]
  %v333 = vld [vmem:[%s2 + $0x10] sm:$0xf]
  %v334 = vld [vmem:[%s2 + $0x14] sm:$0xf]
  %v335 = vld [vmem:[%s2 + $0x18] sm:$0xf]
  %v336 = vld [vmem:[%s2 + $0x1c] sm:$0xf]
  %v337 = vld [vmem:[%s2 + $0x20] sm:$0xf]
  %v338 = vld [vmem:[%s2 + $0x24] sm:$0xf]
  %v339 = vld [vmem:[%s2 + $0x28] sm:$0xf]
  %v340 = vld [vmem:[%s2 + $0x2c] sm:$0xf]
  %v341 = vld [vmem:[%s2 + $0x30] sm:$0xf]
  %v342 = vld [vmem:[%s2 + $0x34] sm:$0xf]
  %v343 = vld [vmem:[%s2 + $0x38] sm:$0xf]
  %v344 = vld [vmem:[%s2 + $0x3c] sm:$0xf]
  %v345 = vpack.c.bf16 %v298, %v297
  %v346 = vpack.c.bf16 %v300, %v299
  %v347 = vpack.c.bf16 %v302, %v301
  %v348 = vpack.c.bf16 %v304, %v303
  %v349 = vpack.c.bf16 %v306, %v305
  %v350 = vpack.c.bf16 %v308, %v307
  %v351 = vpack.c.bf16 %v310, %v309
  %v352 = vpack.c.bf16 %v312, %v311
  %v353 = vpack.c.bf16 %v314, %v313
  %v354 = vpack.c.bf16 %v316, %v315
  %v355 = vpack.c.bf16 %v318, %v317
  %v356 = vpack.c.bf16 %v320, %v319
  %v357 = vpack.c.bf16 %v322, %v321
  %v358 = vpack.c.bf16 %v324, %v323
  %v359 = vpack.c.bf16 %v326, %v325
  %v360 = vpack.c.bf16 %v328, %v327
  %v361 = vld [vmem:[%s4 + $0x1] sm:$0x1]
  %v362 = vperm.slane %v361, 0
  %v379 = vunpack.c.l.b16 %v329
  %v380 = vunpack.c.l.b16 %v330
  %v381 = vunpack.c.l.b16 %v331
  %v382 = vunpack.c.l.b16 %v332
  %v383 = vunpack.c.l.b16 %v333
  %v384 = vunpack.c.l.b16 %v334
  %v385 = vunpack.c.l.b16 %v335
  %v386 = vunpack.c.l.b16 %v336
  %v387 = vunpack.c.l.b16 %v337
  %v388 = vunpack.c.l.b16 %v338
  %v389 = vunpack.c.l.b16 %v339
  %v390 = vunpack.c.l.b16 %v340
  %v391 = vunpack.c.l.b16 %v341
  %v392 = vunpack.c.l.b16 %v342
  %v393 = vunpack.c.l.b16 %v343
  %v394 = vunpack.c.l.b16 %v344
  %v395 = vpack.c.b16 %v380, %v379
  %v396 = vpack.c.b16 %v382, %v381
  %v397 = vpack.c.b16 %v384, %v383
  %v398 = vpack.c.b16 %v386, %v385
  %v399 = vpack.c.b16 %v388, %v387
  %v400 = vpack.c.b16 %v390, %v389
  %v401 = vpack.c.b16 %v392, %v391
  %v402 = vpack.c.b16 %v394, %v393
  %411 = vmatpush.bf16.msra.mxu0 %v402
  %412 = vmatpush.bf16.msra.mxu0 %v401
  %413 = vmatpush.bf16.msra.mxu0 %v400
  %414 = vmatpush.bf16.msra.mxu0 %v399
  %415 = vmatpush.bf16.msra.mxu0 %v398
  %416 = vmatpush.bf16.msra.mxu0 %v397
  %417 = vmatpush.bf16.msra.mxu0 %v396
  %418 = vmatpush.bf16.msra.mxu0 %v395
  %419 = vmatmul.bf16.gmra.mxu0 %v345
  %v420 = vpop.f32.mrf.mxu0
  %v421 = vadd.f32 %v362, %v420
  %v422 = vpop.f32.mrf.mxu0
  %v423 = vadd.f32 %v362, %v422
  %424 = vmatmul.bf16.gmra.mxu0 %v346
  %v425 = vpop.f32.mrf.mxu0
  %v426 = vadd.f32 %v362, %v425
  %v427 = vpop.f32.mrf.mxu0
  %v428 = vadd.f32 %v362, %v427
  %429 = vmatmul.bf16.gmra.mxu0 %v347
  %v430 = vpop.f32.mrf.mxu0
  %v431 = vadd.f32 %v362, %v430
  %v432 = vpop.f32.mrf.mxu0
  %v433 = vadd.f32 %v362, %v432
  %434 = vmatmul.bf16.gmra.mxu0 %v348
  %v435 = vpop.f32.mrf.mxu0
  %v436 = vadd.f32 %v362, %v435
  %v437 = vpop.f32.mrf.mxu0
  %v438 = vadd.f32 %v362, %v437
  %439 = vmatmul.bf16.gmra.mxu0 %v349
  %v440 = vpop.f32.mrf.mxu0
  %v441 = vadd.f32 %v362, %v440
  %v442 = vpop.f32.mrf.mxu0
  %v443 = vadd.f32 %v362, %v442
  %444 = vmatmul.bf16.gmra.mxu0 %v350
  %v445 = vpop.f32.mrf.mxu0
  %v446 = vadd.f32 %v362, %v445
  %v447 = vpop.f32.mrf.mxu0
  %v448 = vadd.f32 %v362, %v447
  %449 = vmatmul.bf16.gmra.mxu0 %v351
  %v450 = vpop.f32.mrf.mxu0
  %v451 = vadd.f32 %v362, %v450
  %v452 = vpop.f32.mrf.mxu0
  %v453 = vadd.f32 %v362, %v452
  %454 = vmatmul.bf16.gmra.mxu0 %v352
  %v455 = vpop.f32.mrf.mxu0
  %v456 = vadd.f32 %v362, %v455
  %v457 = vpop.f32.mrf.mxu0
  %v458 = vadd.f32 %v362, %v457
  %459 = vmatmul.bf16.gmra.mxu0 %v353
  %v460 = vpop.f32.mrf.mxu0
  %v461 = vadd.f32 %v362, %v460
  %v462 = vpop.f32.mrf.mxu0
  %v463 = vadd.f32 %v362, %v462
  %464 = vmatmul.bf16.gmra.mxu0 %v354
  %v465 = vpop.f32.mrf.mxu0
  %v466 = vadd.f32 %v362, %v465
  %v467 = vpop.f32.mrf.mxu0
  %v468 = vadd.f32 %v362, %v467
  %469 = vmatmul.bf16.gmra.mxu0 %v355
  %v470 = vpop.f32.mrf.mxu0
  %v471 = vadd.f32 %v362, %v470
  %v472 = vpop.f32.mrf.mxu0
  %v473 = vadd.f32 %v362, %v472
  %474 = vmatmul.bf16.gmra.mxu0 %v356
  %v475 = vpop.f32.mrf.mxu0
  %v476 = vadd.f32 %v362, %v475
  %v477 = vpop.f32.mrf.mxu0
  %v478 = vadd.f32 %v362, %v477
  %479 = vmatmul.bf16.gmra.mxu0 %v357
  %v480 = vpop.f32.mrf.mxu0
  %v481 = vadd.f32 %v362, %v480
  %v482 = vpop.f32.mrf.mxu0
  %v483 = vadd.f32 %v362, %v482
  %484 = vmatmul.bf16.gmra.mxu0 %v358
  %v485 = vpop.f32.mrf.mxu0
  %v486 = vadd.f32 %v362, %v485
  %v487 = vpop.f32.mrf.mxu0
  %v488 = vadd.f32 %v362, %v487
  %489 = vmatmul.bf16.gmra.mxu0 %v359
  %v490 = vpop.f32.mrf.mxu0
  %v491 = vadd.f32 %v362, %v490
  %v492 = vpop.f32.mrf.mxu0
  %v493 = vadd.f32 %v362, %v492
  %494 = vmatmul.bf16.gmra.mxu0 %v360
  %v495 = vpop.f32.mrf.mxu0
  %v496 = vadd.f32 %v362, %v495
  %v497 = vpop.f32.mrf.mxu0
  %v498 = vadd.f32 %v362, %v497
  %499 = vdwg.mxu0
  %v500 = vmax.f32 %v421, 0.0
  %v501 = vmax.f32 %v423, 0.0
  %v502 = vmax.f32 %v426, 0.0
  %v503 = vmax.f32 %v428, 0.0
  %v504 = vmax.f32 %v431, 0.0
  %v505 = vmax.f32 %v433, 0.0
  %v506 = vmax.f32 %v436, 0.0
  %v507 = vmax.f32 %v438, 0.0
  %v508 = vmax.f32 %v441, 0.0
  %v509 = vmax.f32 %v443, 0.0
  %v510 = vmax.f32 %v446, 0.0
  %v511 = vmax.f32 %v448, 0.0
  %v512 = vmax.f32 %v451, 0.0
  %v513 = vmax.f32 %v453, 0.0
  %v514 = vmax.f32 %v456, 0.0
  %v515 = vmax.f32 %v458, 0.0
  %v516 = vmax.f32 %v461, 0.0
  %v517 = vmax.f32 %v463, 0.0
  %v518 = vmax.f32 %v466, 0.0
  %v519 = vmax.f32 %v468, 0.0
  %v520 = vmax.f32 %v471, 0.0
  %v521 = vmax.f32 %v473, 0.0
  %v522 = vmax.f32 %v476, 0.0
  %v523 = vmax.f32 %v478, 0.0
  %v524 = vmax.f32 %v481, 0.0
  %v525 = vmax.f32 %v483, 0.0
  %v526 = vmax.f32 %v486, 0.0
  %v527 = vmax.f32 %v488, 0.0
  %v528 = vmax.f32 %v491, 0.0
  %v529 = vmax.f32 %v493, 0.0
  %v530 = vmax.f32 %v496, 0.0
  %v531 = vmax.f32 %v498, 0.0
  %v532 = vld [vmem:[%s3] sm:$0xf]
  %v533 = vld [vmem:[%s3 + $0x4] sm:$0xf]
  %v534 = vld [vmem:[%s3 + $0x8] sm:$0xf]
  %v535 = vld [vmem:[%s3 + $0xc] sm:$0xf]
  %v536 = vld [vmem:[%s3 + $0x10] sm:$0xf]
  %v537 = vld [vmem:[%s3 + $0x14] sm:$0xf]
  %v538 = vld [vmem:[%s3 + $0x18] sm:$0xf]
  %v539 = vld [vmem:[%s3 + $0x1c] sm:$0xf]
  %v540 = vld [vmem:[%s3 + $0x20] sm:$0xf]
  %v541 = vld [vmem:[%s3 + $0x24] sm:$0xf]
  %v542 = vld [vmem:[%s3 + $0x28] sm:$0xf]
  %v543 = vld [vmem:[%s3 + $0x2c] sm:$0xf]
  %v544 = vld [vmem:[%s3 + $0x30] sm:$0xf]
  %v545 = vld [vmem:[%s3 + $0x34] sm:$0xf]
  %v546 = vld [vmem:[%s3 + $0x38] sm:$0xf]
  %v547 = vld [vmem:[%s3 + $0x3c] sm:$0xf]
  %v548 = vpack.c.bf16 %v501, %v500
  %v549 = vpack.c.bf16 %v503, %v502
  %v550 = vpack.c.bf16 %v505, %v504
  %v551 = vpack.c.bf16 %v507, %v506
  %v552 = vpack.c.bf16 %v509, %v508
  %v553 = vpack.c.bf16 %v511, %v510
  %v554 = vpack.c.bf16 %v513, %v512
  %v555 = vpack.c.bf16 %v515, %v514
  %v556 = vpack.c.bf16 %v517, %v516
  %v557 = vpack.c.bf16 %v519, %v518
  %v558 = vpack.c.bf16 %v521, %v520
  %v559 = vpack.c.bf16 %v523, %v522
  %v560 = vpack.c.bf16 %v525, %v524
  %v561 = vpack.c.bf16 %v527, %v526
  %v562 = vpack.c.bf16 %v529, %v528
  %v563 = vpack.c.bf16 %v531, %v530
  %v564 = vld [vmem:[%s4 + $0x2] sm:$0x1]
  %v565 = vperm.slane %v564, 0
  %v582 = vunpack.c.l.b16 %v532
  %v583 = vunpack.c.l.b16 %v533
  %v584 = vunpack.c.l.b16 %v534
  %v585 = vunpack.c.l.b16 %v535
  %v586 = vunpack.c.l.b16 %v536
  %v587 = vunpack.c.l.b16 %v537
  %v588 = vunpack.c.l.b16 %v538
  %v589 = vunpack.c.l.b16 %v539
  %v590 = vunpack.c.l.b16 %v540
  %v591 = vunpack.c.l.b16 %v541
  %v592 = vunpack.c.l.b16 %v542
  %v593 = vunpack.c.l.b16 %v543
  %v594 = vunpack.c.l.b16 %v544
  %v595 = vunpack.c.l.b16 %v545
  %v596 = vunpack.c.l.b16 %v546
  %v597 = vunpack.c.l.b16 %v547
  %v598 = vpack.c.b16 %v583, %v582
  %v599 = vpack.c.b16 %v585, %v584
  %v600 = vpack.c.b16 %v587, %v586
  %v601 = vpack.c.b16 %v589, %v588
  %v602 = vpack.c.b16 %v591, %v590
  %v603 = vpack.c.b16 %v593, %v592
  %v604 = vpack.c.b16 %v595, %v594
  %v605 = vpack.c.b16 %v597, %v596
  %614 = vmatpush.bf16.msra.mxu0 %v605
  %615 = vmatpush.bf16.msra.mxu0 %v604
  %616 = vmatpush.bf16.msra.mxu0 %v603
  %617 = vmatpush.bf16.msra.mxu0 %v602
  %618 = vmatpush.bf16.msra.mxu0 %v601
  %619 = vmatpush.bf16.msra.mxu0 %v600
  %620 = vmatpush.bf16.msra.mxu0 %v599
  %621 = vmatpush.bf16.msra.mxu0 %v598
  %622 = vmatmul.bf16.gmra.mxu0 %v548
  %v623 = vpop.f32.mrf.mxu0
  %v624 = vadd.f32 %v565, %v623
  %v625 = vpop.f32.mrf.mxu0
  %v626 = vadd.f32 %v565, %v625
  %627 = vmatmul.bf16.gmra.mxu0 %v549
  %v628 = vpop.f32.mrf.mxu0
  %v629 = vadd.f32 %v565, %v628
  %v630 = vpop.f32.mrf.mxu0
  %v631 = vadd.f32 %v565, %v630
  %632 = vmatmul.bf16.gmra.mxu0 %v550
  %v633 = vpop.f32.mrf.mxu0
  %v634 = vadd.f32 %v565, %v633
  %v635 = vpop.f32.mrf.mxu0
  %v636 = vadd.f32 %v565, %v635
  %637 = vmatmul.bf16.gmra.mxu0 %v551
  %v638 = vpop.f32.mrf.mxu0
  %v639 = vadd.f32 %v565, %v638
  %v640 = vpop.f32.mrf.mxu0
  %v641 = vadd.f32 %v565, %v640
  %642 = vmatmul.bf16.gmra.mxu0 %v552
  %v643 = vpop.f32.mrf.mxu0
  %v644 = vadd.f32 %v565, %v643
  %v645 = vpop.f32.mrf.mxu0
  %v646 = vadd.f32 %v565, %v645
  %647 = vmatmul.bf16.gmra.mxu0 %v553
  %v648 = vpop.f32.mrf.mxu0
  %v649 = vadd.f32 %v565, %v648
  %v650 = vpop.f32.mrf.mxu0
  %v651 = vadd.f32 %v565, %v650
  %652 = vmatmul.bf16.gmra.mxu0 %v554
  %v653 = vpop.f32.mrf.mxu0
  %v654 = vadd.f32 %v565, %v653
  %v655 = vpop.f32.mrf.mxu0
  %v656 = vadd.f32 %v565, %v655
  %657 = vmatmul.bf16.gmra.mxu0 %v555
  %v658 = vpop.f32.mrf.mxu0
  %v659 = vadd.f32 %v565, %v658
  %v660 = vpop.f32.mrf.mxu0
  %v661 = vadd.f32 %v565, %v660
  %662 = vmatmul.bf16.gmra.mxu0 %v556
  %v663 = vpop.f32.mrf.mxu0
  %v664 = vadd.f32 %v565, %v663
  %v665 = vpop.f32.mrf.mxu0
  %v666 = vadd.f32 %v565, %v665
  %667 = vmatmul.bf16.gmra.mxu0 %v557
  %v668 = vpop.f32.mrf.mxu0
  %v669 = vadd.f32 %v565, %v668
  %v670 = vpop.f32.mrf.mxu0
  %v671 = vadd.f32 %v565, %v670
  %672 = vmatmul.bf16.gmra.mxu0 %v558
  %v673 = vpop.f32.mrf.mxu0
  %v674 = vadd.f32 %v565, %v673
  %v675 = vpop.f32.mrf.mxu0
  %v676 = vadd.f32 %v565, %v675
  %677 = vmatmul.bf16.gmra.mxu0 %v559
  %v678 = vpop.f32.mrf.mxu0
  %v679 = vadd.f32 %v565, %v678
  %v680 = vpop.f32.mrf.mxu0
  %v681 = vadd.f32 %v565, %v680
  %682 = vmatmul.bf16.gmra.mxu0 %v560
  %v683 = vpop.f32.mrf.mxu0
  %v684 = vadd.f32 %v565, %v683
  %v685 = vpop.f32.mrf.mxu0
  %v686 = vadd.f32 %v565, %v685
  %687 = vmatmul.bf16.gmra.mxu0 %v561
  %v688 = vpop.f32.mrf.mxu0
  %v689 = vadd.f32 %v565, %v688
  %v690 = vpop.f32.mrf.mxu0
  %v691 = vadd.f32 %v565, %v690
  %692 = vmatmul.bf16.gmra.mxu0 %v562
  %v693 = vpop.f32.mrf.mxu0
  %v694 = vadd.f32 %v565, %v693
  %v695 = vpop.f32.mrf.mxu0
  %v696 = vadd.f32 %v565, %v695
  %697 = vmatmul.bf16.gmra.mxu0 %v563
  %v698 = vpop.f32.mrf.mxu0
  %v699 = vadd.f32 %v565, %v698
  %v700 = vpop.f32.mrf.mxu0
  %v701 = vadd.f32 %v565, %v700
  %702 = vdwg.mxu0
  %v703 = vpack.c.bf16 %v624, %v624
  %v704 = vpack.c.bf16 %v626, %v626
  %v705 = vpack.c.bf16 %v629, %v629
  %v706 = vpack.c.bf16 %v631, %v631
  %v707 = vpack.c.bf16 %v634, %v634
  %v708 = vpack.c.bf16 %v636, %v636
  %v709 = vpack.c.bf16 %v639, %v639
  %v710 = vpack.c.bf16 %v641, %v641
  %v711 = vpack.c.bf16 %v644, %v644
  %v712 = vpack.c.bf16 %v646, %v646
  %v713 = vpack.c.bf16 %v649, %v649
  %v714 = vpack.c.bf16 %v651, %v651
  %v715 = vpack.c.bf16 %v654, %v654
  %v716 = vpack.c.bf16 %v656, %v656
  %v717 = vpack.c.bf16 %v659, %v659
  %v718 = vpack.c.bf16 %v661, %v661
  %v719 = vpack.c.bf16 %v664, %v664
  %v720 = vpack.c.bf16 %v666, %v666
  %v721 = vpack.c.bf16 %v669, %v669
  %v722 = vpack.c.bf16 %v671, %v671
  %v723 = vpack.c.bf16 %v674, %v674
  %v724 = vpack.c.bf16 %v676, %v676
  %v725 = vpack.c.bf16 %v679, %v679
  %v726 = vpack.c.bf16 %v681, %v681
  %v727 = vpack.c.bf16 %v684, %v684
  %v728 = vpack.c.bf16 %v686, %v686
  %v729 = vpack.c.bf16 %v689, %v689
  %v730 = vpack.c.bf16 %v691, %v691
  %v731 = vpack.c.bf16 %v694, %v694
  %v732 = vpack.c.bf16 %v696, %v696
  %v733 = vpack.c.bf16 %v699, %v699
  %v734 = vpack.c.bf16 %v701, %v701
  %735 = vst [vmem:[%s5] sm:$0xf] %v703
  %736 = vst [vmem:[%s5 + $0x4] sm:$0xf] %v704
  %737 = vst [vmem:[%s5 + $0x8] sm:$0xf] %v705
  %738 = vst [vmem:[%s5 + $0xc] sm:$0xf] %v706
  %739 = vst [vmem:[%s5 + $0x10] sm:$0xf] %v707
  %740 = vst [vmem:[%s5 + $0x14] sm:$0xf] %v708
  %741 = vst [vmem:[%s5 + $0x18] sm:$0xf] %v709
  %742 = vst [vmem:[%s5 + $0x1c] sm:$0xf] %v710
  %743 = vst [vmem:[%s5 + $0x20] sm:$0xf] %v711
  %744 = vst [vmem:[%s5 + $0x24] sm:$0xf] %v712
  %745 = vst [vmem:[%s5 + $0x28] sm:$0xf] %v713
  %746 = vst [vmem:[%s5 + $0x2c] sm:$0xf] %v714
  %747 = vst [vmem:[%s5 + $0x30] sm:$0xf] %v715
  %748 = vst [vmem:[%s5 + $0x34] sm:$0xf] %v716
  %749 = vst [vmem:[%s5 + $0x38] sm:$0xf] %v717
  %750 = vst [vmem:[%s5 + $0x3c] sm:$0xf] %v718
  %751 = vst [vmem:[%s5 + $0x40] sm:$0xf] %v719
  %752 = vst [vmem:[%s5 + $0x44] sm:$0xf] %v720
  %753 = vst [vmem:[%s5 + $0x48] sm:$0xf] %v721
  %754 = vst [vmem:[%s5 + $0x4c] sm:$0xf] %v722
  %755 = vst [vmem:[%s5 + $0x50] sm:$0xf] %v723
  %756 = vst [vmem:[%s5 + $0x54] sm:$0xf] %v724
  %757 = vst [vmem:[%s5 + $0x58] sm:$0xf] %v725
  %758 = vst [vmem:[%s5 + $0x5c] sm:$0xf] %v726
  %759 = vst [vmem:[%s5 + $0x60] sm:$0xf] %v727
  %760 = vst [vmem:[%s5 + $0x64] sm:$0xf] %v728
  %761 = vst [vmem:[%s5 + $0x68] sm:$0xf] %v729
  %762 = vst [vmem:[%s5 + $0x6c] sm:$0xf] %v730
  %763 = vst [vmem:[%s5 + $0x70] sm:$0xf] %v731
  %764 = vst [vmem:[%s5 + $0x74] sm:$0xf] %v732
  %765 = vst [vmem:[%s5 + $0x78] sm:$0xf] %v733
  %766 = vst [vmem:[%s5 + $0x7c] sm:$0xf] %v734
  // Predicated region
  $region22: #{_fcnn_forward_impl.1} parent=0 // pred_check
    _
  $region23: #{_fcnn_forward_impl.1} parent=0 // pred_check_branch
    %768 = sbr.rel (0) target = $region25
  $region24: #{_fcnn_forward_impl.1} parent=0 // pred_region
    _
  $region25: #{_fcnn_forward_impl.1} parent=0 // pred_fallthru
    _
  // Predicated region
  $region26: #{_fcnn_forward_impl.1} parent=0 // pred_check
    _
  $region27: #{_fcnn_forward_impl.1} parent=0 // pred_check_branch
    %770 = sbr.rel (0) target = $region29
  $region28: #{_fcnn_forward_impl.1} parent=0 // pred_region
    _
  $region29: #{_fcnn_forward_impl.1} parent=0 // pred_fallthru
    _

</llo_original>
